<compile_context>
chip_gen: v7x
topology: tpu7x:2x2x1
jax: 0.10.0
libtpu: 0.0.40
codegen_flags: <defaults>
</compile_context>

<pallas_src>
import jax
import jax.numpy as jnp
from jax.experimental import pallas as pl
from jax.experimental.pallas import tpu as pltpu

QPM_INDEX = 0          # tempo lives at channel 0 of out_total, as in virtuoso
OUT_LANES = 128        # channel dim padded to a full 128-lane slab (lane-dense stores)
NEG_INF = -1e10


# ----------------------------------------------------------------------------
# Fused kernel: one grid step per batch element.
#   slab        = hidden @ fc_w_pad + fc_b_pad            (fc outputs in lanes 1..F)
#   attention   : a = tanh(slab @ Wa_pad + ba_pad); s = sum(a * cv_pad, -1)
#                 masked softmax over the notes of each beat; pooled = w @ slab
#   tempo       : VPU reduce over beat features (Out = 1), gathered per note via a
#                 one-hot VPU multiply + lane reduce, written into lane 0
#   final mask  : rows with note_emb.sum(-1) == 0 are zeroed before the single store
# ----------------------------------------------------------------------------
def _fused_decoder_kernel(
    hid_ref,        # (1, N, H)   bf16  surrogate output_lstm hidden stream
    beat_ref,       # (1, S, Kb)  f32   beat embedding
    zsb_row_ref,    # (1, 1, N)   int32 zero-shifted beat idx / note (sentinel S = pad)
    zsb_col_ref,    # (1, N, 1)   int32 same values, column orientation
    ns_ref,         # (1, N, 1)   f32   note_emb.sum(-1)
    fcw_ref,        # (H, 128)    bf16  fc weight      (cols 1..F)
    fcb_ref,        # (1, 128)    f32   fc bias        (cols 1..F)
    aw_ref,         # (128, 128)  bf16  attn weight    (rows/cols 1..F)
    ab_ref,         # (1, 128)    f32   attn bias      (cols 1..F)
    cv_ref,         # (1, 128)    f32   attn ctx vec   (cols 1..F)
    tw_ref,         # (1, Kb)     f32   beat_tempo_fc weight (row form)
    tb_ref,         # (1, 1)      f32   beat_tempo_fc bias
    out_ref,        # (1, N, 128) f32   out_total slab (ch0 = tempo, ch1..F = fc)
    br_ref,         # (1, S, 128) f32   beat_results slab (ch1..F)
):
    N = hid_ref.shape[1]
    S = beat_ref.shape[1]
    L = out_ref.shape[2]

    # ---- self.fc : (N, 128) slab, fc outputs land in lanes 1..F ---------------
    slab = (
        jnp.dot(hid_ref[0], fcw_ref[...], preferred_element_type=jnp.float32)
        + fcb_ref[...]
    )                                                            # (N, L) f32
    slab_bf = slab.astype(jnp.bfloat16)

    # ---- result_for_tempo_attention (ContextAttention, num_head=1) ------------
    a = jnp.tanh(
        jnp.dot(slab_bf, aw_ref[...], preferred_element_type=jnp.float32)
        + ab_ref[...]
    )                                                            # (N, L) f32
    s = jnp.sum(a * cv_ref[...], axis=-1, keepdims=True)         # (N, 1)  VPU + XLU
    s_row = jnp.transpose(s)                                     # (1, N)  tiny XLU

    beat_ids = jax.lax.broadcasted_iota(jnp.int32, (S, N), 0)    # (S, N)
    mask_b = beat_ids == zsb_row_ref[0]                          # (S, N) bool
    mask_f = mask_b.astype(jnp.float32)
    scores = jnp.where(mask_b, s_row, NEG_INF)                   # (S, N)
    scores = scores - jnp.max(scores, axis=-1, keepdims=True)
    e = jnp.exp(scores) * mask_f                                 # empty beats -> all 0
    denom = jnp.maximum(jnp.sum(e, axis=-1, keepdims=True), 1e-20)
    w = e / denom                                                # per-beat softmax
    pooled = jnp.dot(w.astype(jnp.bfloat16), slab_bf,
                     preferred_element_type=jnp.float32)         # (S, L)  MXU
    br_ref[0] = pooled.astype(br_ref.dtype)                      # empty beats stay 0

    # ---- self.beat_tempo_fc (Out = 1) on the VPU, gathered per note -----------
    tempo = (
        jnp.sum(beat_ref[0] * tw_ref[...], axis=-1, keepdims=True) + tb_ref[...]
    )                                                            # (S, 1)
    tempo_row = jnp.transpose(tempo)                             # (1, S)
    note_ids = jax.lax.broadcasted_iota(jnp.int32, (N, S), 1)    # (N, S)
    onehot = (note_ids == zsb_col_ref[0]).astype(jnp.float32)    # one-hot beat gather
    tempo_note = jnp.sum(onehot * tempo_row, axis=-1,
                         keepdims=True)                          # (N, 1)  VPU + XLU
    chan0 = (jax.lax.broadcasted_iota(jnp.int32, (1, L), 1) == 0).astype(jnp.float32)
    out_slab = slab + tempo_note * chan0                         # tempo -> lane 0

    # ---- out_total[note_emb.sum(-1) == 0] = 0 ---------------------------------
    keep = ns_ref[0] != 0.0                                      # (N, 1)
    out_ref[0] = jnp.where(keep, out_slab, 0.0).astype(out_ref.dtype)


# ----------------------------------------------------------------------------
# Parameters: logical shapes mirror HanDecoder.__init__; pack_params pads the
# channel dims to 128 lanes ONCE and pre-casts MXU operands to bf16.
# ----------------------------------------------------------------------------
def init_params(key, out_features, beat_size, final_hidden):
    ks = jax.random.split(key, 6)
    u = lambda k, shape: jax.random.uniform(k, shape, jnp.float32, -0.1, 0.1)
    return {
        # ContextAttention(output_size - 1, num_head=1)
        "attn_w": u(ks[0], (out_features, out_features)),
        "attn_b": u(ks[1], (1, out_features)),
        "attn_cv": u(ks[2], (1, out_features)),      # context vector stored as a row
        # nn.Linear(beat.size, 1)
        "tempo_w": u(ks[3], (1, beat_size)),         # row form for VPU reduce
        "tempo_b": jnp.zeros((1, 1), jnp.float32),
        # nn.Linear(final_hidden_size, output_size - 1)
        "fc_w": u(ks[4], (final_hidden, out_features)),
        "fc_b": u(ks[5], (1, out_features)),
    }


def pack_params(p):
    F = p["fc_w"].shape[1]
    H = p["fc_w"].shape[0]
    L = OUT_LANES
    assert F + 1 <= L
    fc_w = jnp.zeros((H, L), jnp.float32).at[:, 1:F + 1].set(p["fc_w"])
    fc_b = jnp.zeros((1, L), jnp.float32).at[:, 1:F + 1].set(p["fc_b"])
    aw = jnp.zeros((L, L), jnp.float32).at[1:F + 1, 1:F + 1].set(p["attn_w"])
    ab = jnp.zeros((1, L), jnp.float32).at[:, 1:F + 1].set(p["attn_b"])
    cv = jnp.zeros((1, L), jnp.float32).at[:, 1:F + 1].set(p["attn_cv"])
    return {
        "fc_w": fc_w.astype(jnp.bfloat16),   # MXU operands in bf16, f32 accumulation
        "fc_b": fc_b,
        "attn_w": aw.astype(jnp.bfloat16),
        "attn_b": ab,
        "attn_cv": cv,
        "tempo_w": p["tempo_w"],             # VPU path stays f32 (v5e-safe)
        "tempo_b": p["tempo_b"],
        "out_features": F,
    }


# ----------------------------------------------------------------------------
# Forward wrapper: prepares tiny int32 index arrays, launches ONE fused kernel,
# and slices the lane-dense slabs back to logical widths.
# ----------------------------------------------------------------------------
def han_decoder_forward(packed, score_embedding, note_locations, final_rnn_hidden):
    note_emb = score_embedding["note"]                           # (B, N, note_size)
    beat_emb = score_embedding["beat"].astype(jnp.float32)       # (B, S, beat_size)
    beat_numbers = note_locations["beat"].astype(jnp.int32)      # (B, N)

    B, N, _ = note_emb.shape
    S, Kb = beat_emb.shape[1], beat_emb.shape[2]
    H = final_rnn_hidden.shape[2]
    F = packed["out_features"]

    # TODO(synk): perf_emb = handle_style_vector(...) returns None in the base class.
    zsb = jnp.clip(beat_numbers - beat_numbers[:, 0:1], 0, S - 1)
    note_sum = jnp.sum(note_emb, axis=-1, keepdims=True)         # (B, N, 1)
    valid = note_sum[..., 0] != 0.0                              # (B, N)
    zsb = jnp.where(valid, zsb, S).astype(jnp.int32)             # sentinel S = padded note
    zsb_row = zsb[:, None, :]                                    # (B, 1, N)
    zsb_col = zsb[:, :, None]                                    # (B, N, 1)

    hidden_bf = final_rnn_hidden.astype(jnp.bfloat16)            # halve DMA bytes

    out_slab, beat_slab = pl.pallas_call(
        _fused_decoder_kernel,
        out_shape=(
            jax.ShapeDtypeStruct((B, N, OUT_LANES), jnp.float32),
            jax.ShapeDtypeStruct((B, S, OUT_LANES), jnp.float32),
        ),
        grid=(B,),
        in_specs=[
            pl.BlockSpec((1, N, H), lambda b: (b, 0, 0)),
            pl.BlockSpec((1, S, Kb), lambda b: (b, 0, 0)),
            pl.BlockSpec((1, 1, N), lambda b: (b, 0, 0)),
            pl.BlockSpec((1, N, 1), lambda b: (b, 0, 0)),
            pl.BlockSpec((1, N, 1), lambda b: (b, 0, 0)),
            pl.BlockSpec((H, OUT_LANES), lambda b: (0, 0)),           # grid-invariant weights
            pl.BlockSpec((1, OUT_LANES), lambda b: (0, 0)),
            pl.BlockSpec((OUT_LANES, OUT_LANES), lambda b: (0, 0)),
            pl.BlockSpec((1, OUT_LANES), lambda b: (0, 0)),
            pl.BlockSpec((1, OUT_LANES), lambda b: (0, 0)),
            pl.BlockSpec((1, Kb), lambda b: (0, 0)),
            pl.BlockSpec((1, 1), lambda b: (0, 0)),
        ],
        out_specs=(
            pl.BlockSpec((1, N, OUT_LANES), lambda b: (b, 0, 0)),
            pl.BlockSpec((1, S, OUT_LANES), lambda b: (b, 0, 0)),
        ),
        compiler_params=pltpu.CompilerParams(dimension_semantics=("parallel",)),
    )(
        hidden_bf, beat_emb, zsb_row, zsb_col, note_sum,
        packed["fc_w"], packed["fc_b"],
        packed["attn_w"], packed["attn_b"], packed["attn_cv"],
        packed["tempo_w"], packed["tempo_b"],
    )

    out_total = out_slab[:, :, : F + 1]        # channel 0 = tempo, 1..F = fc outputs
    beat_results = beat_slab[:, :, 1 : F + 1]  # attention-pooled fc outputs per beat
    return out_total, [beat_results]


# ----------------------------------------------------------------------------
# Pure-JAX reference of the same defined compute (f32) for correctness checking.
# ----------------------------------------------------------------------------
def _ref_forward(params, note_emb, beat_emb, beat_numbers, hidden):
    B, N, _ = note_emb.shape
    S = beat_emb.shape[1]
    slab = jnp.einsum("bnh,hf->bnf", hidden, params["fc_w"]) + params["fc_b"]
    a = jnp.tanh(jnp.einsum("bnf,fg->bng", slab, params["attn_w"]) + params["attn_b"])
    s = jnp.sum(a * params["attn_cv"], axis=-1)                                  # (B,N)
    valid = jnp.sum(note_emb, axis=-1) != 0
    zsb = jnp.clip(beat_numbers - beat_numbers[:, :1], 0, S - 1)
    zsb = jnp.where(valid, zsb, S)
    seg = zsb[:, None, :] == jnp.arange(S)[None, :, None]                        # (B,S,N)
    scores = jnp.where(seg, s[:, None, :], NEG_INF)
    scores = scores - jnp.max(scores, axis=-1, keepdims=True)
    e = jnp.exp(scores) * seg.astype(jnp.float32)
    w = e / jnp.maximum(jnp.sum(e, axis=-1, keepdims=True), 1e-20)
    beat_results = jnp.einsum("bsn,bnf->bsf", w, slab)
    tempo = jnp.einsum("bsk,ok->bso", beat_emb, params["tempo_w"]) + params["tempo_b"]
    gather = (jnp.arange(S)[None, None, :] == zsb[:, :, None]).astype(jnp.float32)
    tempo_note = jnp.einsum("bns,bso->bno", gather, tempo)                       # (B,N,1)
    out = jnp.concatenate([tempo_note, slab], axis=-1)
    out = jnp.where(valid[..., None], out, 0.0)
    return out, beat_results


# ----------------------------------------------------------------------------
if __name__ == "__main__":
    key = jax.random.PRNGKey(0)
    ks = jax.random.split(key, 5)

    # small shapes consistent with the module
    B, N, S = 2, 16, 6
    note_size, beat_size, final_hidden = 8, 32, 32
    output_size = 12
    F = output_size - 1  # fc.out_features

    note_emb = jax.random.normal(ks[0], (B, N, note_size), jnp.float32)
    note_emb = note_emb.at[1, -3:].set(0.0)                # zero-padded tail notes
    beat_emb = jax.random.normal(ks[1], (B, S, beat_size), jnp.float32)
    measure_emb = jax.random.normal(ks[2], (B, S, beat_size), jnp.float32)

    base_beats = (jnp.arange(N) // 3).astype(jnp.int32)    # 0..5, ~3 notes per beat
    beat_numbers = jnp.stack([base_beats + 5, base_beats + 2], axis=0)       # (B, N)
    measure_numbers = base_beats[None, :] // 2 + jnp.zeros((B, 1), jnp.int32)

    # TODO(synk): surrogate for the undefined self.output_lstm per-note hidden outputs.
    final_rnn_hidden = jax.random.normal(ks[3], (B, N, final_hidden), jnp.float32)

    params = init_params(ks[4], F, beat_size, final_hidden)
    packed = pack_params(params)

    score_embedding = {"note": note_emb, "beat": beat_emb, "measure": measure_emb}
    note_locations = {"beat": beat_numbers, "measure": measure_numbers}

    out_total, aux = han_decoder_forward(
        packed, score_embedding, note_locations, final_rnn_hidden
    )
    jax.block_until_ready(out_total)
    jax.block_until_ready(aux[0])

    assert out_total.shape == (B, N, F + 1)
    assert aux[0].shape == (B, S, F)
    # padded notes must be zeroed
    assert float(jnp.abs(out_total[1, -3:]).sum()) == 0.0

    # correctness vs. pure-JAX f32 reference (bf16 MXU inside the kernel -> loose tol)
    ref_out, ref_beat = _ref_forward(
        params, note_emb, beat_emb, beat_numbers, final_rnn_hidden
    )
    assert jnp.allclose(out_total, ref_out, rtol=5e-2, atol=2e-2), "out_total mismatch"
    assert jnp.allclose(aux[0], ref_beat, rtol=5e-2, atol=2e-2), "beat_results mismatch"

    print("KERNEL_OK")
</pallas_src>

<mosaic_0001>
module attributes {stable_mosaic.version = 11 : i64} {
  func.func @_fused_decoder_kernel(%arg0: i32, %arg1: memref<1x16x32xbf16, #tpu.memory_space<vmem>>, %arg2: memref<1x6x32xf32, #tpu.memory_space<vmem>>, %arg3: memref<1x1x16xi32, #tpu.memory_space<vmem>>, %arg4: memref<1x16x1xi32, #tpu.memory_space<vmem>>, %arg5: memref<1x16x1xf32, #tpu.memory_space<vmem>>, %arg6: memref<32x128xbf16, #tpu.memory_space<vmem>>, %arg7: memref<1x128xf32, #tpu.memory_space<vmem>>, %arg8: memref<128x128xbf16, #tpu.memory_space<vmem>>, %arg9: memref<1x128xf32, #tpu.memory_space<vmem>>, %arg10: memref<1x128xf32, #tpu.memory_space<vmem>>, %arg11: memref<1x32xf32, #tpu.memory_space<vmem>>, %arg12: memref<1x1xf32, #tpu.memory_space<vmem>>, %arg13: memref<1x16x128xf32, #tpu.memory_space<vmem>>, %arg14: memref<1x6x128xf32, #tpu.memory_space<vmem>>) attributes {dimension_semantics = [#tpu.dimension_semantics<parallel>], iteration_bounds = array<i64: 2>, scalar_prefetch = 0 : i64, scratch_operands = 0 : i64, tpu.core_type = #tpu.core_type<tc>, window_params = [{transform_indices = @transform_0, window_bounds = array<i64: 1, 16, 32>}, {transform_indices = @transform_1, window_bounds = array<i64: 1, 6, 32>}, {transform_indices = @transform_2, window_bounds = array<i64: 1, 1, 16>}, {transform_indices = @transform_3, window_bounds = array<i64: 1, 16, 1>}, {transform_indices = @transform_4, window_bounds = array<i64: 1, 16, 1>}, {pipeline_mode = #tpu.pipeline_mode<synchronous>, transform_indices = @transform_5, window_bounds = array<i64: 32, 128>}, {pipeline_mode = #tpu.pipeline_mode<synchronous>, transform_indices = @transform_6, window_bounds = array<i64: 1, 128>}, {pipeline_mode = #tpu.pipeline_mode<synchronous>, transform_indices = @transform_7, window_bounds = array<i64: 128, 128>}, {pipeline_mode = #tpu.pipeline_mode<synchronous>, transform_indices = @transform_8, window_bounds = array<i64: 1, 128>}, {pipeline_mode = #tpu.pipeline_mode<synchronous>, transform_indices = @transform_9, window_bounds = array<i64: 1, 128>}, {pipeline_mode = #tpu.pipeline_mode<synchronous>, transform_indices = @transform_10, window_bounds = array<i64: 1, 32>}, {pipeline_mode = #tpu.pipeline_mode<synchronous>, transform_indices = @transform_11, window_bounds = array<i64: 1, 1>}, {transform_indices = @transform_12, window_bounds = array<i64: 1, 16, 128>}, {transform_indices = @transform_13, window_bounds = array<i64: 1, 6, 128>}]} {
    %c0 = arith.constant 0 : index
    %c0_0 = arith.constant 0 : index
    %c0_1 = arith.constant 0 : index
    %0 = vector.load %arg1[%c0, %c0_0, %c0_1] : memref<1x16x32xbf16, #tpu.memory_space<vmem>>, vector<1x16x32xbf16>
    %1 = vector.shape_cast %0 : vector<1x16x32xbf16> to vector<16x32xbf16>
    %c0_2 = arith.constant 0 : index
    %c0_3 = arith.constant 0 : index
    %2 = vector.load %arg6[%c0_2, %c0_3] : memref<32x128xbf16, #tpu.memory_space<vmem>>, vector<32x128xbf16>
    %cst = arith.constant dense<0.000000e+00> : vector<16x128xf32>
    %3 = tpu.matmul %1, %2, %cst {dimension_numbers = #tpu.dot_dimension_numbers<[1], [0], [0], [1], [0, 0, 1, 1], [], []>} : vector<16x32xbf16>, vector<32x128xbf16>, vector<16x128xf32> -> vector<16x128xf32>
    %c0_4 = arith.constant 0 : index
    %c0_5 = arith.constant 0 : index
    %4 = vector.load %arg7[%c0_4, %c0_5] : memref<1x128xf32, #tpu.memory_space<vmem>>, vector<1x128xf32>
    %5 = vector.broadcast %4 : vector<1x128xf32> to vector<16x128xf32>
    %6 = arith.addf %3, %5 : vector<16x128xf32>
    %7 = arith.truncf %6 : vector<16x128xf32> to vector<16x128xbf16>
    %c0_6 = arith.constant 0 : index
    %c0_7 = arith.constant 0 : index
    %8 = vector.load %arg8[%c0_6, %c0_7] : memref<128x128xbf16, #tpu.memory_space<vmem>>, vector<128x128xbf16>
    %cst_8 = arith.constant dense<0.000000e+00> : vector<16x128xf32>
    %9 = tpu.matmul %7, %8, %cst_8 {dimension_numbers = #tpu.dot_dimension_numbers<[1], [0], [0], [1], [0, 0, 1, 1], [], []>} : vector<16x128xbf16>, vector<128x128xbf16>, vector<16x128xf32> -> vector<16x128xf32>
    %c0_9 = arith.constant 0 : index
    %c0_10 = arith.constant 0 : index
    %10 = vector.load %arg9[%c0_9, %c0_10] : memref<1x128xf32, #tpu.memory_space<vmem>>, vector<1x128xf32>
    %11 = vector.broadcast %10 : vector<1x128xf32> to vector<16x128xf32>
    %12 = arith.addf %9, %11 : vector<16x128xf32>
    %13 = math.tanh %12 : vector<16x128xf32>
    %c0_11 = arith.constant 0 : index
    %c0_12 = arith.constant 0 : index
    %14 = vector.load %arg10[%c0_11, %c0_12] : memref<1x128xf32, #tpu.memory_space<vmem>>, vector<1x128xf32>
    %15 = vector.broadcast %14 : vector<1x128xf32> to vector<16x128xf32>
    %16 = arith.mulf %13, %15 : vector<16x128xf32>
    %cst_13 = arith.constant dense<0.000000e+00> : vector<16xf32>
    %17 = vector.multi_reduction <add>, %16, %cst_13 [1] : vector<16x128xf32> to vector<16xf32>
    %18 = vector.shape_cast %17 : vector<16xf32> to vector<16x1xf32>
    %19 = tpu.transpose %18, [1, 0] : vector<16x1xf32> -> vector<1x16xf32>
    %20 = tpu.iota {dimensions = array<i32: 0>} : vector<6x16xi32>
    %c0_14 = arith.constant 0 : index
    %c0_15 = arith.constant 0 : index
    %c0_16 = arith.constant 0 : index
    %21 = vector.load %arg3[%c0_14, %c0_15, %c0_16] : memref<1x1x16xi32, #tpu.memory_space<vmem>>, vector<1x1x16xi32>
    %22 = vector.shape_cast %21 : vector<1x1x16xi32> to vector<1x16xi32>
    %23 = vector.broadcast %22 : vector<1x16xi32> to vector<6x16xi32>
    %24 = arith.cmpi eq, %20, %23 : vector<6x16xi32>
    %25 = arith.extui %24 : vector<6x16xi1> to vector<6x16xi32>
    %26 = arith.sitofp %25 : vector<6x16xi32> to vector<6x16xf32>
    %cst_17 = arith.constant -1.000000e+10 : f32
    %27 = vector.shape_cast %19 : vector<1x16xf32> to vector<1x16xf32>
    %28 = vector.broadcast %27 : vector<1x16xf32> to vector<6x16xf32>
    %29 = vector.broadcast %cst_17 : f32 to vector<6x16xf32>
    %30 = arith.select %24, %28, %29 : vector<6x16xi1>, vector<6x16xf32>
    %cst_18 = arith.constant dense<0xFF800000> : vector<6xf32>
    %31 = vector.multi_reduction <maximumf>, %30, %cst_18 [1] : vector<6x16xf32> to vector<6xf32>
    %32 = vector.shape_cast %31 : vector<6xf32> to vector<6x1xf32>
    %33 = vector.broadcast %32 : vector<6x1xf32> to vector<6x16xf32>
    %34 = arith.subf %30, %33 : vector<6x16xf32>
    %35 = math.exp %34 : vector<6x16xf32>
    %36 = arith.mulf %35, %26 : vector<6x16xf32>
    %cst_19 = arith.constant dense<0.000000e+00> : vector<6xf32>
    %37 = vector.multi_reduction <add>, %36, %cst_19 [1] : vector<6x16xf32> to vector<6xf32>
    %38 = vector.shape_cast %37 : vector<6xf32> to vector<6x1xf32>
    %cst_20 = arith.constant 9.99999968E-21 : f32
    %39 = vector.broadcast %cst_20 : f32 to vector<6x1xf32>
    %40 = arith.maximumf %38, %39 : vector<6x1xf32>
    %41 = vector.broadcast %40 : vector<6x1xf32> to vector<6x16xf32>
    %42 = arith.divf %36, %41 : vector<6x16xf32>
    %43 = arith.truncf %42 : vector<6x16xf32> to vector<6x16xbf16>
    %cst_21 = arith.constant dense<0.000000e+00> : vector<6x128xf32>
    %44 = tpu.matmul %43, %7, %cst_21 {dimension_numbers = #tpu.dot_dimension_numbers<[1], [0], [0], [1], [0, 0, 1, 1], [], []>} : vector<6x16xbf16>, vector<16x128xbf16>, vector<6x128xf32> -> vector<6x128xf32>
    %c0_22 = arith.constant 0 : index
    %c0_23 = arith.constant 0 : index
    %c0_24 = arith.constant 0 : index
    %45 = vector.load %arg14[%c0_22, %c0_23, %c0_24] : memref<1x6x128xf32, #tpu.memory_space<vmem>>, vector<1x6x128xf32>
    %46 = vector.shape_cast %45 : vector<1x6x128xf32> to vector<6x128xf32>
    %47 = vector.shape_cast %44 : vector<6x128xf32> to vector<1x6x128xf32>
    tpu.vector_store %arg14[%c0_22, %c0_23, %c0_24], %47 {strides = array<i32>} : memref<1x6x128xf32, #tpu.memory_space<vmem>>, vector<1x6x128xf32>,
    %c0_25 = arith.constant 0 : index
    %c0_26 = arith.constant 0 : index
    %c0_27 = arith.constant 0 : index
    %48 = vector.load %arg2[%c0_25, %c0_26, %c0_27] : memref<1x6x32xf32, #tpu.memory_space<vmem>>, vector<1x6x32xf32>
    %49 = vector.shape_cast %48 : vector<1x6x32xf32> to vector<6x32xf32>
    %c0_28 = arith.constant 0 : index
    %c0_29 = arith.constant 0 : index
    %50 = vector.load %arg11[%c0_28, %c0_29] : memref<1x32xf32, #tpu.memory_space<vmem>>, vector<1x32xf32>
    %51 = vector.broadcast %50 : vector<1x32xf32> to vector<6x32xf32>
    %52 = arith.mulf %49, %51 : vector<6x32xf32>
    %cst_30 = arith.constant dense<0.000000e+00> : vector<6xf32>
    %53 = vector.multi_reduction <add>, %52, %cst_30 [1] : vector<6x32xf32> to vector<6xf32>
    %54 = vector.shape_cast %53 : vector<6xf32> to vector<6x1xf32>
    %c0_31 = arith.constant 0 : index
    %c0_32 = arith.constant 0 : index
    %55 = vector.load %arg12[%c0_31, %c0_32] : memref<1x1xf32, #tpu.memory_space<vmem>>, vector<1x1xf32>
    %56 = vector.broadcast %55 : vector<1x1xf32> to vector<6x1xf32>
    %57 = arith.addf %54, %56 : vector<6x1xf32>
    %58 = tpu.transpose %57, [1, 0] : vector<6x1xf32> -> vector<1x6xf32>
    %59 = tpu.iota {dimensions = array<i32: 1>} : vector<16x6xi32>
    %c0_33 = arith.constant 0 : index
    %c0_34 = arith.constant 0 : index
    %c0_35 = arith.constant 0 : index
    %60 = vector.load %arg4[%c0_33, %c0_34, %c0_35] : memref<1x16x1xi32, #tpu.memory_space<vmem>>, vector<1x16x1xi32>
    %61 = vector.shape_cast %60 : vector<1x16x1xi32> to vector<16x1xi32>
    %62 = vector.broadcast %61 : vector<16x1xi32> to vector<16x6xi32>
    %63 = arith.cmpi eq, %59, %62 : vector<16x6xi32>
    %64 = arith.extui %63 : vector<16x6xi1> to vector<16x6xi32>
    %65 = arith.sitofp %64 : vector<16x6xi32> to vector<16x6xf32>
    %66 = vector.broadcast %58 : vector<1x6xf32> to vector<16x6xf32>
    %67 = arith.mulf %65, %66 : vector<16x6xf32>
    %cst_36 = arith.constant dense<0.000000e+00> : vector<16xf32>
    %68 = vector.multi_reduction <add>, %67, %cst_36 [1] : vector<16x6xf32> to vector<16xf32>
    %69 = vector.shape_cast %68 : vector<16xf32> to vector<16x1xf32>
    %70 = tpu.iota {dimensions = array<i32: 1>} : vector<1x128xi32>
    %c0_i32 = arith.constant 0 : i32
    %71 = vector.broadcast %c0_i32 : i32 to vector<1x128xi32>
    %72 = arith.cmpi eq, %70, %71 : vector<1x128xi32>
    %73 = arith.extui %72 : vector<1x128xi1> to vector<1x128xi32>
    %74 = arith.sitofp %73 : vector<1x128xi32> to vector<1x128xf32>
    %75 = vector.broadcast %69 : vector<16x1xf32> to vector<16x128xf32>
    %76 = vector.broadcast %74 : vector<1x128xf32> to vector<16x128xf32>
    %77 = arith.mulf %75, %76 : vector<16x128xf32>
    %78 = arith.addf %6, %77 : vector<16x128xf32>
    %c0_37 = arith.constant 0 : index
    %c0_38 = arith.constant 0 : index
    %c0_39 = arith.constant 0 : index
    %79 = vector.load %arg5[%c0_37, %c0_38, %c0_39] : memref<1x16x1xf32, #tpu.memory_space<vmem>>, vector<1x16x1xf32>
    %80 = vector.shape_cast %79 : vector<1x16x1xf32> to vector<16x1xf32>
    %cst_40 = arith.constant 0.000000e+00 : f32
    %81 = vector.broadcast %cst_40 : f32 to vector<16x1xf32>
    %82 = arith.cmpf one, %80, %81 : vector<16x1xf32>
    %cst_41 = arith.constant 0.000000e+00 : f32
    %83 = vector.shape_cast %82 : vector<16x1xi1> to vector<16x1xi1>
    %84 = vector.broadcast %83 : vector<16x1xi1> to vector<16x128xi1>
    %85 = vector.broadcast %cst_41 : f32 to vector<16x128xf32>
    %86 = arith.select %84, %78, %85 : vector<16x128xi1>, vector<16x128xf32>
    %c0_42 = arith.constant 0 : index
    %c0_43 = arith.constant 0 : index
    %c0_44 = arith.constant 0 : index
    %87 = vector.load %arg13[%c0_42, %c0_43, %c0_44] : memref<1x16x128xf32, #tpu.memory_space<vmem>>, vector<1x16x128xf32>
    %88 = vector.shape_cast %87 : vector<1x16x128xf32> to vector<16x128xf32>
    %89 = vector.shape_cast %86 : vector<16x128xf32> to vector<1x16x128xf32>
    tpu.vector_store %arg13[%c0_42, %c0_43, %c0_44], %89 {strides = array<i32>} : memref<1x16x128xf32, #tpu.memory_space<vmem>>, vector<1x16x128xf32>,
    return
  }
  func.func @transform_0(%arg0: i32) -> (i32, i32, i32) {
    %c0_i32 = arith.constant 0 : i32
    %c0_i32_0 = arith.constant 0 : i32
    %c0_i32_1 = arith.constant 0 : i32
    return %arg0, %c0_i32, %c0_i32_0 : i32, i32, i32
  }
  func.func @transform_1(%arg0: i32) -> (i32, i32, i32) {
    %c0_i32 = arith.constant 0 : i32
    %c0_i32_0 = arith.constant 0 : i32
    %c0_i32_1 = arith.constant 0 : i32
    return %arg0, %c0_i32, %c0_i32_0 : i32, i32, i32
  }
  func.func @transform_2(%arg0: i32) -> (i32, i32, i32) {
    %c0_i32 = arith.constant 0 : i32
    %c0_i32_0 = arith.constant 0 : i32
    %c0_i32_1 = arith.constant 0 : i32
    return %arg0, %c0_i32, %c0_i32_0 : i32, i32, i32
  }
  func.func @transform_3(%arg0: i32) -> (i32, i32, i32) {
    %c0_i32 = arith.constant 0 : i32
    %c0_i32_0 = arith.constant 0 : i32
    %c0_i32_1 = arith.constant 0 : i32
    return %arg0, %c0_i32, %c0_i32_0 : i32, i32, i32
  }
  func.func @transform_4(%arg0: i32) -> (i32, i32, i32) {
    %c0_i32 = arith.constant 0 : i32
    %c0_i32_0 = arith.constant 0 : i32
    %c0_i32_1 = arith.constant 0 : i32
    return %arg0, %c0_i32, %c0_i32_0 : i32, i32, i32
  }
  func.func @transform_5(%arg0: i32) -> (i32, i32) {
    %c0_i32 = arith.constant 0 : i32
    %c0_i32_0 = arith.constant 0 : i32
    %c0_i32_1 = arith.constant 0 : i32
    return %c0_i32, %c0_i32_0 : i32, i32
  }
  func.func @transform_6(%arg0: i32) -> (i32, i32) {
    %c0_i32 = arith.constant 0 : i32
    %c0_i32_0 = arith.constant 0 : i32
    %c0_i32_1 = arith.constant 0 : i32
    return %c0_i32, %c0_i32_0 : i32, i32
  }
  func.func @transform_7(%arg0: i32) -> (i32, i32) {
    %c0_i32 = arith.constant 0 : i32
    %c0_i32_0 = arith.constant 0 : i32
    %c0_i32_1 = arith.constant 0 : i32
    return %c0_i32, %c0_i32_0 : i32, i32
  }
  func.func @transform_8(%arg0: i32) -> (i32, i32) {
    %c0_i32 = arith.constant 0 : i32
    %c0_i32_0 = arith.constant 0 : i32
    %c0_i32_1 = arith.constant 0 : i32
    return %c0_i32, %c0_i32_0 : i32, i32
  }
  func.func @transform_9(%arg0: i32) -> (i32, i32) {
    %c0_i32 = arith.constant 0 : i32
    %c0_i32_0 = arith.constant 0 : i32
    %c0_i32_1 = arith.constant 0 : i32
    return %c0_i32, %c0_i32_0 : i32, i32
  }
  func.func @transform_10(%arg0: i32) -> (i32, i32) {
    %c0_i32 = arith.constant 0 : i32
    %c0_i32_0 = arith.constant 0 : i32
    %c0_i32_1 = arith.constant 0 : i32
    return %c0_i32, %c0_i32_0 : i32, i32
  }
  func.func @transform_11(%arg0: i32) -> (i32, i32) {
    %c0_i32 = arith.constant 0 : i32
    %c0_i32_0 = arith.constant 0 : i32
    %c0_i32_1 = arith.constant 0 : i32
    return %c0_i32, %c0_i32_0 : i32, i32
  }
  func.func @transform_12(%arg0: i32) -> (i32, i32, i32) {
    %c0_i32 = arith.constant 0 : i32
    %c0_i32_0 = arith.constant 0 : i32
    %c0_i32_1 = arith.constant 0 : i32
    return %arg0, %c0_i32, %c0_i32_0 : i32, i32, i32
  }
  func.func @transform_13(%arg0: i32) -> (i32, i32, i32) {
    %c0_i32 = arith.constant 0 : i32
    %c0_i32_0 = arith.constant 0 : i32
    %c0_i32_1 = arith.constant 0 : i32
    return %arg0, %c0_i32, %c0_i32_0 : i32, i32, i32
  }
}

</mosaic_0001>

<llo_original>
// kernel: tpu_custom_call.1
$region0: #{tpu_custom_call.1}
  #allocation0 [shape = 'u32[]', space=smem, size = 0x4, offset = 0x4, fixed_abs, tag = 'smem constant byte address 0x4 - core index']
  #allocation1 [shape = 'u32[144,128]{1,0:T(1,128)}', space=vmem, size = 0x12000, scoped, tag = 'internal scratch']
  #allocation2 [shape = 'f32[1,1]{1,0:T(1,128)S(1)}', space=vmem, size = 0x200, scoped, tag = 'scoped memory for tpu_custom_call.1']
  %s0 = inlined_call_operand.vmem [shape: bf16[2,16,32], index: 0, kind: input, shape index: {}]
  %s1 = inlined_call_operand.vmem [shape: f32[2,6,32], index: 1, kind: input, shape index: {}]
  %s2 = inlined_call_operand.vmem [shape: s32[2,1,16], index: 2, kind: input, shape index: {}]
  %s3 = inlined_call_operand.vmem [shape: s32[2,16,1], index: 3, kind: input, shape index: {}]
  %s4 = inlined_call_operand.vmem [shape: f32[2,16,1], index: 4, kind: input, shape index: {}]
  %s5 = inlined_call_operand.vmem [shape: bf16[32,128], index: 5, kind: input, shape index: {}]
  %s6 = inlined_call_operand.vmem [shape: f32[1,128], index: 6, kind: input, shape index: {}]
  %s7 = inlined_call_operand.vmem [shape: bf16[128,128], index: 7, kind: input, shape index: {}]
  %s8 = inlined_call_operand.vmem [shape: f32[1,128], index: 8, kind: input, shape index: {}]
  %s9 = inlined_call_operand.vmem [shape: f32[1,128], index: 9, kind: input, shape index: {}]
  %s10 = inlined_call_operand.vmem [shape: f32[1,32], index: 10, kind: input, shape index: {}]
  %s11 = inlined_call_operand.<no memory space> [shape: f32[1,1], index: 11, kind: input, shape index: {}]
  %s12 = inlined_call_operand.hbm [shape: f32[2,16,128], index: 12, kind: output, shape index: {0}]
  %s13 = inlined_call_operand.vmem [shape: f32[2,6,128], index: 13, kind: output, shape index: {1}]
  %14 = xla_tuple %s12, %s13
  %s15 = sld [smem:[#allocation0]]
  $region89: #{tpu_custom_call.1} parent=0
    _
  %s17 = ssub.s32 1, %s15
  %s18 = scalar_select 0, %s17, %s15
  %v19 = vstv %s11
  %20 = vst [vmem:[#allocation2] sm:$0x1] %v19
  $region1: #{tpu_custom_call.1} parent=0
    #allocation3 [shape = 'u8[16384]{0}', space=vmem, size = 0x4000, scoped, tag = 'output window, operand 0']
    #allocation4 [shape = 's32[2]{0}', space=sflag, size = 0x8, scoped, tag = 'scoped memory for tpu_custom_call.1']
    %21 = vsyncpa [#allocation4], 0
    %s22 = scalar_lea.sflag [#allocation4], 1
    %23 = vsyncpa %s22, 0
    loop: start=0, step=1, limit=4
    $region2: #{tpu_custom_call.1} parent=1 // loop_pre_header
      _
    $region3: #{tpu_custom_call.1} parent=1 // loop_header
      %s25 = sphi 0, %s29
      %p26 = scmp.ge.s32.totalorder %s25, 4
      %s35 = sphi 0, %s37
      %s38 = sphi 0, %s35
      %s39 = sphi 0, %s38
      %s55 = sphi 0, %s39
      %s61 = sphi 0, %s63
      %s64 = sphi 0, %s61
      %s65 = sphi 0, %s64
      %s81 = sphi 0, %s65
      %s87 = sphi 0, %s89
      %s90 = sphi 0, %s87
      %s91 = sphi 0, %s90
      %s107 = sphi 0, %s91
      %s113 = sphi 0, %s115
      %s116 = sphi 0, %s113
      %s117 = sphi 0, %s116
      %s133 = sphi 0, %s117
      %s139 = sphi 0, %s141
      %s142 = sphi 0, %s139
      %s143 = sphi 0, %s142
      %s159 = sphi 0, %s143
      %s163 = sphi 0, %s163
      %s165 = sphi 0, %s163
      %s166 = sphi 0, %s165
      %s180 = sphi 0, %s166
      %s184 = sphi 0, %s184
      %s186 = sphi 0, %s184
      %s187 = sphi 0, %s186
      %s201 = sphi 0, %s187
      %s205 = sphi 0, %s205
      %s207 = sphi 0, %s205
      %s208 = sphi 0, %s207
      %s222 = sphi 0, %s208
      %s226 = sphi 0, %s226
      %s228 = sphi 0, %s226
      %s229 = sphi 0, %s228
      %s243 = sphi 0, %s229
      %s247 = sphi 0, %s247
      %s249 = sphi 0, %s247
      %s250 = sphi 0, %s249
      %s264 = sphi 0, %s250
      %s268 = sphi 0, %s268
      %s270 = sphi 0, %s268
      %s271 = sphi 0, %s270
      %s285 = sphi 0, %s271
      %s289 = sphi 0, %s289
      %s291 = sphi 0, %s289
      %s292 = sphi 0, %s291
      %s306 = sphi 0, %s292
      %s312 = sphi 0, %s314
      %s315 = sphi 0, %s312
      %s316 = sphi 0, %s315
      %s332 = sphi 0, %s316
      %s338 = sphi 0, %s340
      %s341 = sphi 0, %s338
      %s342 = sphi 0, %s341
      %s358 = sphi 0, %s342
    $region4: #{tpu_custom_call.1} parent=1 // loop_header_branch
      %28 = sbr.rel (%p26) target = $region8
    $region5: #{tpu_custom_call.1} parent=1 // loop_body
      %s30 = ssub.s32 %s25, 1
      %s31 = ssub.s32 %s25, 2
      %s32 = sadd.s32 %s25, 1
      %s33 = ssub.s32 %s25, %s32
      %p34 = scmp.eq.s32.totalorder %s33, 0
      %s36 = sadd.s32 %s35, 1
      %s37 = scalar_select %p34, %s35, %s36
      %p40 = pneg %p34
      %p41 = scmp.eq.s32.totalorder %s25, 1
      %p42 = por %p40, %p41
      %p43 = scmp.ne.s32.totalorder %s35, %s38
      %p44 = scmp.eq.s32.totalorder %s25, 0
      %p45 = por %p43, %p44
      %p46 = scmp.ne.s32.totalorder %s35, %s38
      %p47 = scmp.eq.s32.totalorder %s30, 1
      %p48 = por %p46, %p47
      %p49 = scmp.ne.s32.totalorder %s38, %s39
      %p50 = scmp.eq.s32.totalorder %s30, 0
      %p51 = por %p49, %p50
      %p52 = scmp.ne.s32.totalorder %s38, %s39
      %p53 = scmp.eq.s32.totalorder %s31, 1
      %p54 = por %p52, %p53
      %p56 = scmp.ne.s32.totalorder %s39, %s55
      %p57 = scmp.eq.s32.totalorder %s31, 0
      %p58 = por %p56, %p57
      %s59 = ssub.s32 %s25, %s32
      %p60 = scmp.eq.s32.totalorder %s59, 0
      %s62 = sadd.s32 %s61, 1
      %s63 = scalar_select %p60, %s61, %s62
      %p66 = pneg %p60
      %p67 = scmp.eq.s32.totalorder %s25, 1
      %p68 = por %p66, %p67
      %p69 = scmp.ne.s32.totalorder %s61, %s64
      %p70 = scmp.eq.s32.totalorder %s25, 0
      %p71 = por %p69, %p70
      %p72 = scmp.ne.s32.totalorder %s61, %s64
      %p73 = scmp.eq.s32.totalorder %s30, 1
      %p74 = por %p72, %p73
      %p75 = scmp.ne.s32.totalorder %s64, %s65
      %p76 = scmp.eq.s32.totalorder %s30, 0
      %p77 = por %p75, %p76
      %p78 = scmp.ne.s32.totalorder %s64, %s65
      %p79 = scmp.eq.s32.totalorder %s31, 1
      %p80 = por %p78, %p79
      %p82 = scmp.ne.s32.totalorder %s65, %s81
      %p83 = scmp.eq.s32.totalorder %s31, 0
      %p84 = por %p82, %p83
      %s85 = ssub.s32 %s25, %s32
      %p86 = scmp.eq.s32.totalorder %s85, 0
      %s88 = sadd.s32 %s87, 1
      %s89 = scalar_select %p86, %s87, %s88
      %p92 = pneg %p86
      %p93 = scmp.eq.s32.totalorder %s25, 1
      %p94 = por %p92, %p93
      %p95 = scmp.ne.s32.totalorder %s87, %s90
      %p96 = scmp.eq.s32.totalorder %s25, 0
      %p97 = por %p95, %p96
      %p98 = scmp.ne.s32.totalorder %s87, %s90
      %p99 = scmp.eq.s32.totalorder %s30, 1
      %p100 = por %p98, %p99
      %p101 = scmp.ne.s32.totalorder %s90, %s91
      %p102 = scmp.eq.s32.totalorder %s30, 0
      %p103 = por %p101, %p102
      %p104 = scmp.ne.s32.totalorder %s90, %s91
      %p105 = scmp.eq.s32.totalorder %s31, 1
      %p106 = por %p104, %p105
      %p108 = scmp.ne.s32.totalorder %s91, %s107
      %p109 = scmp.eq.s32.totalorder %s31, 0
      %p110 = por %p108, %p109
      %s111 = ssub.s32 %s25, %s32
      %p112 = scmp.eq.s32.totalorder %s111, 0
      %s114 = sadd.s32 %s113, 1
      %s115 = scalar_select %p112, %s113, %s114
      %p118 = pneg %p112
      %p119 = scmp.eq.s32.totalorder %s25, 1
      %p120 = por %p118, %p119
      %p121 = scmp.ne.s32.totalorder %s113, %s116
      %p122 = scmp.eq.s32.totalorder %s25, 0
      %p123 = por %p121, %p122
      %p124 = scmp.ne.s32.totalorder %s113, %s116
      %p125 = scmp.eq.s32.totalorder %s30, 1
      %p126 = por %p124, %p125
      %p127 = scmp.ne.s32.totalorder %s116, %s117
      %p128 = scmp.eq.s32.totalorder %s30, 0
      %p129 = por %p127, %p128
      %p130 = scmp.ne.s32.totalorder %s116, %s117
      %p131 = scmp.eq.s32.totalorder %s31, 1
      %p132 = por %p130, %p131
      %p134 = scmp.ne.s32.totalorder %s117, %s133
      %p135 = scmp.eq.s32.totalorder %s31, 0
      %p136 = por %p134, %p135
      %s137 = ssub.s32 %s25, %s32
      %p138 = scmp.eq.s32.totalorder %s137, 0
      %s140 = sadd.s32 %s139, 1
      %s141 = scalar_select %p138, %s139, %s140
      %p144 = pneg %p138
      %p145 = scmp.eq.s32.totalorder %s25, 1
      %p146 = por %p144, %p145
      %p147 = scmp.ne.s32.totalorder %s139, %s142
      %p148 = scmp.eq.s32.totalorder %s25, 0
      %p149 = por %p147, %p148
      %p150 = scmp.ne.s32.totalorder %s139, %s142
      %p151 = scmp.eq.s32.totalorder %s30, 1
      %p152 = por %p150, %p151
      %p153 = scmp.ne.s32.totalorder %s142, %s143
      %p154 = scmp.eq.s32.totalorder %s30, 0
      %p155 = por %p153, %p154
      %p156 = scmp.ne.s32.totalorder %s142, %s143
      %p157 = scmp.eq.s32.totalorder %s31, 1
      %p158 = por %p156, %p157
      %p160 = scmp.ne.s32.totalorder %s143, %s159
      %p161 = scmp.eq.s32.totalorder %s31, 0
      %p162 = por %p160, %p161
      %s164 = sadd.s32 %s163, 1
      %p167 = scmp.eq.s32.totalorder %s25, 1
      %p168 = scmp.ne.s32.totalorder %s163, %s165
      %p169 = scmp.eq.s32.totalorder %s25, 0
      %p170 = por %p168, %p169
      %p171 = scmp.ne.s32.totalorder %s163, %s165
      %p172 = scmp.eq.s32.totalorder %s30, 1
      %p173 = por %p171, %p172
      %p174 = scmp.ne.s32.totalorder %s165, %s166
      %p175 = scmp.eq.s32.totalorder %s30, 0
      %p176 = por %p174, %p175
      %p177 = scmp.ne.s32.totalorder %s165, %s166
      %p178 = scmp.eq.s32.totalorder %s31, 1
      %p179 = por %p177, %p178
      %p181 = scmp.ne.s32.totalorder %s166, %s180
      %p182 = scmp.eq.s32.totalorder %s31, 0
      %p183 = por %p181, %p182
      %s185 = sadd.s32 %s184, 1
      %p188 = scmp.eq.s32.totalorder %s25, 1
      %p189 = scmp.ne.s32.totalorder %s184, %s186
      %p190 = scmp.eq.s32.totalorder %s25, 0
      %p191 = por %p189, %p190
      %p192 = scmp.ne.s32.totalorder %s184, %s186
      %p193 = scmp.eq.s32.totalorder %s30, 1
      %p194 = por %p192, %p193
      %p195 = scmp.ne.s32.totalorder %s186, %s187
      %p196 = scmp.eq.s32.totalorder %s30, 0
      %p197 = por %p195, %p196
      %p198 = scmp.ne.s32.totalorder %s186, %s187
      %p199 = scmp.eq.s32.totalorder %s31, 1
      %p200 = por %p198, %p199
      %p202 = scmp.ne.s32.totalorder %s187, %s201
      %p203 = scmp.eq.s32.totalorder %s31, 0
      %p204 = por %p202, %p203
      %s206 = sadd.s32 %s205, 1
      %p209 = scmp.eq.s32.totalorder %s25, 1
      %p210 = scmp.ne.s32.totalorder %s205, %s207
      %p211 = scmp.eq.s32.totalorder %s25, 0
      %p212 = por %p210, %p211
      %p213 = scmp.ne.s32.totalorder %s205, %s207
      %p214 = scmp.eq.s32.totalorder %s30, 1
      %p215 = por %p213, %p214
      %p216 = scmp.ne.s32.totalorder %s207, %s208
      %p217 = scmp.eq.s32.totalorder %s30, 0
      %p218 = por %p216, %p217
      %p219 = scmp.ne.s32.totalorder %s207, %s208
      %p220 = scmp.eq.s32.totalorder %s31, 1
      %p221 = por %p219, %p220
      %p223 = scmp.ne.s32.totalorder %s208, %s222
      %p224 = scmp.eq.s32.totalorder %s31, 0
      %p225 = por %p223, %p224
      %s227 = sadd.s32 %s226, 1
      %p230 = scmp.eq.s32.totalorder %s25, 1
      %p231 = scmp.ne.s32.totalorder %s226, %s228
      %p232 = scmp.eq.s32.totalorder %s25, 0
      %p233 = por %p231, %p232
      %p234 = scmp.ne.s32.totalorder %s226, %s228
      %p235 = scmp.eq.s32.totalorder %s30, 1
      %p236 = por %p234, %p235
      %p237 = scmp.ne.s32.totalorder %s228, %s229
      %p238 = scmp.eq.s32.totalorder %s30, 0
      %p239 = por %p237, %p238
      %p240 = scmp.ne.s32.totalorder %s228, %s229
      %p241 = scmp.eq.s32.totalorder %s31, 1
      %p242 = por %p240, %p241
      %p244 = scmp.ne.s32.totalorder %s229, %s243
      %p245 = scmp.eq.s32.totalorder %s31, 0
      %p246 = por %p244, %p245
      %s248 = sadd.s32 %s247, 1
      %p251 = scmp.eq.s32.totalorder %s25, 1
      %p252 = scmp.ne.s32.totalorder %s247, %s249
      %p253 = scmp.eq.s32.totalorder %s25, 0
      %p254 = por %p252, %p253
      %p255 = scmp.ne.s32.totalorder %s247, %s249
      %p256 = scmp.eq.s32.totalorder %s30, 1
      %p257 = por %p255, %p256
      %p258 = scmp.ne.s32.totalorder %s249, %s250
      %p259 = scmp.eq.s32.totalorder %s30, 0
      %p260 = por %p258, %p259
      %p261 = scmp.ne.s32.totalorder %s249, %s250
      %p262 = scmp.eq.s32.totalorder %s31, 1
      %p263 = por %p261, %p262
      %p265 = scmp.ne.s32.totalorder %s250, %s264
      %p266 = scmp.eq.s32.totalorder %s31, 0
      %p267 = por %p265, %p266
      %s269 = sadd.s32 %s268, 1
      %p272 = scmp.eq.s32.totalorder %s25, 1
      %p273 = scmp.ne.s32.totalorder %s268, %s270
      %p274 = scmp.eq.s32.totalorder %s25, 0
      %p275 = por %p273, %p274
      %p276 = scmp.ne.s32.totalorder %s268, %s270
      %p277 = scmp.eq.s32.totalorder %s30, 1
      %p278 = por %p276, %p277
      %p279 = scmp.ne.s32.totalorder %s270, %s271
      %p280 = scmp.eq.s32.totalorder %s30, 0
      %p281 = por %p279, %p280
      %p282 = scmp.ne.s32.totalorder %s270, %s271
      %p283 = scmp.eq.s32.totalorder %s31, 1
      %p284 = por %p282, %p283
      %p286 = scmp.ne.s32.totalorder %s271, %s285
      %p287 = scmp.eq.s32.totalorder %s31, 0
      %p288 = por %p286, %p287
      %s290 = sadd.s32 %s289, 1
      %p293 = scmp.eq.s32.totalorder %s25, 1
      %p294 = scmp.ne.s32.totalorder %s289, %s291
      %p295 = scmp.eq.s32.totalorder %s25, 0
      %p296 = por %p294, %p295
      %p297 = scmp.ne.s32.totalorder %s289, %s291
      %p298 = scmp.eq.s32.totalorder %s30, 1
      %p299 = por %p297, %p298
      %p300 = scmp.ne.s32.totalorder %s291, %s292
      %p301 = scmp.eq.s32.totalorder %s30, 0
      %p302 = por %p300, %p301
      %p303 = scmp.ne.s32.totalorder %s291, %s292
      %p304 = scmp.eq.s32.totalorder %s31, 1
      %p305 = por %p303, %p304
      %p307 = scmp.ne.s32.totalorder %s292, %s306
      %p308 = scmp.eq.s32.totalorder %s31, 0
      %p309 = por %p307, %p308
      %s310 = ssub.s32 %s25, %s32
      %p311 = scmp.eq.s32.totalorder %s310, 0
      %s313 = sadd.s32 %s312, 1
      %s314 = scalar_select %p311, %s312, %s313
      %p317 = pneg %p311
      %p318 = scmp.eq.s32.totalorder %s25, 1
      %p319 = por %p317, %p318
      %p320 = scmp.ne.s32.totalorder %s312, %s315
      %p321 = scmp.eq.s32.totalorder %s25, 0
      %p322 = por %p320, %p321
      %p323 = scmp.ne.s32.totalorder %s312, %s315
      %p324 = scmp.eq.s32.totalorder %s30, 1
      %p325 = por %p323, %p324
      %p326 = scmp.ne.s32.totalorder %s315, %s316
      %p327 = scmp.eq.s32.totalorder %s30, 0
      %p328 = por %p326, %p327
      %p329 = scmp.ne.s32.totalorder %s315, %s316
      %p330 = scmp.eq.s32.totalorder %s31, 1
      %p331 = por %p329, %p330
      %p333 = scmp.ne.s32.totalorder %s316, %s332
      %p334 = scmp.eq.s32.totalorder %s31, 0
      %p335 = por %p333, %p334
      %s336 = ssub.s32 %s25, %s32
      %p337 = scmp.eq.s32.totalorder %s336, 0
      %s339 = sadd.s32 %s338, 1
      %s340 = scalar_select %p337, %s338, %s339
      %p343 = pneg %p337
      %p344 = scmp.eq.s32.totalorder %s25, 1
      %p345 = por %p343, %p344
      %p346 = scmp.ne.s32.totalorder %s338, %s341
      %p347 = scmp.eq.s32.totalorder %s25, 0
      %p348 = por %p346, %p347
      %p349 = scmp.ne.s32.totalorder %s338, %s341
      %p350 = scmp.eq.s32.totalorder %s30, 1
      %p351 = por %p349, %p350
      %p352 = scmp.ne.s32.totalorder %s341, %s342
      %p353 = scmp.eq.s32.totalorder %s30, 0
      %p354 = por %p352, %p353
      %p355 = scmp.ne.s32.totalorder %s341, %s342
      %p356 = scmp.eq.s32.totalorder %s31, 1
      %p357 = por %p355, %p356
      %p359 = scmp.ne.s32.totalorder %s342, %s358
      %p360 = scmp.eq.s32.totalorder %s31, 0
      %p361 = por %p359, %p360
      %p362 = scmp.le.s32.totalorder 1, %s25
      %p363 = scmp.lt.s32.totalorder %s25, 3
      %p364 = pnand %p362, %p363
      %p365 = pneg %p364
      // Predicated region
      $region9: #{tpu_custom_call.1} parent=5 // pred_check
        _
      $region10: #{tpu_custom_call.1} parent=5 // pred_check_branch
        %367 = sbr.rel (%p364) target = $region12
      $region11: #{tpu_custom_call.1} parent=5 // pred_region
        %s368 = ssub.s32 %s25, 1
        // Predicated region
        $region13: #{tpu_custom_call.1} parent=11 // pred_check
          %p369 = pneg %p176
        $region14: #{tpu_custom_call.1} parent=11 // pred_check_branch
          %371 = sbr.rel (%p369) target = $region16
        $region15: #{tpu_custom_call.1} parent=11 // pred_region
          _
        $region16: #{tpu_custom_call.1} parent=11 // pred_fallthru
          _
        // Predicated region
        $region17: #{tpu_custom_call.1} parent=11 // pred_check
          %p372 = pneg %p197
        $region18: #{tpu_custom_call.1} parent=11 // pred_check_branch
          %374 = sbr.rel (%p372) target = $region20
        $region19: #{tpu_custom_call.1} parent=11 // pred_region
          _
        $region20: #{tpu_custom_call.1} parent=11 // pred_fallthru
          _
        // Predicated region
        $region21: #{tpu_custom_call.1} parent=11 // pred_check
          %p375 = pneg %p218
        $region22: #{tpu_custom_call.1} parent=11 // pred_check_branch
          %377 = sbr.rel (%p375) target = $region24
        $region23: #{tpu_custom_call.1} parent=11 // pred_region
          _
        $region24: #{tpu_custom_call.1} parent=11 // pred_fallthru
          _
        // Predicated region
        $region25: #{tpu_custom_call.1} parent=11 // pred_check
          %p378 = pneg %p239
        $region26: #{tpu_custom_call.1} parent=11 // pred_check_branch
          %380 = sbr.rel (%p378) target = $region28
        $region27: #{tpu_custom_call.1} parent=11 // pred_region
          _
        $region28: #{tpu_custom_call.1} parent=11 // pred_fallthru
          _
        // Predicated region
        $region29: #{tpu_custom_call.1} parent=11 // pred_check
          %p381 = pneg %p260
        $region30: #{tpu_custom_call.1} parent=11 // pred_check_branch
          %383 = sbr.rel (%p381) target = $region32
        $region31: #{tpu_custom_call.1} parent=11 // pred_region
          _
        $region32: #{tpu_custom_call.1} parent=11 // pred_fallthru
          _
        // Predicated region
        $region33: #{tpu_custom_call.1} parent=11 // pred_check
          %p384 = pneg %p281
        $region34: #{tpu_custom_call.1} parent=11 // pred_check_branch
          %386 = sbr.rel (%p384) target = $region36
        $region35: #{tpu_custom_call.1} parent=11 // pred_region
          _
        $region36: #{tpu_custom_call.1} parent=11 // pred_fallthru
          _
        // Predicated region
        $region37: #{tpu_custom_call.1} parent=11 // pred_check
          %p387 = pneg %p302
        $region38: #{tpu_custom_call.1} parent=11 // pred_check_branch
          %389 = sbr.rel (%p387) target = $region40
        $region39: #{tpu_custom_call.1} parent=11 // pred_region
          _
        $region40: #{tpu_custom_call.1} parent=11 // pred_fallthru
          _
      $region12: #{tpu_custom_call.1} parent=5 // pred_fallthru
        _
      %p390 = scmp.lt.s32.totalorder %s25, 2
      // Predicated region
      $region41: #{tpu_custom_call.1} parent=5 // pred_check
        %p391 = pneg %p390
      $region42: #{tpu_custom_call.1} parent=5 // pred_check_branch
        %393 = sbr.rel (%p391) target = $region44
      $region43: #{tpu_custom_call.1} parent=5 // pred_region
        // Predicated region
        $region45: #{tpu_custom_call.1} parent=43 // pred_check
          %p394 = pneg %p45
        $region46: #{tpu_custom_call.1} parent=43 // pred_check_branch
          %396 = sbr.rel (%p394) target = $region48
        $region47: #{tpu_custom_call.1} parent=43 // pred_region
          %p397 = scmp.lt.s32.totalorder %s25, 1
          %s398 = scalar_select %p397, %s25, 1
          %s399 = smul.addr %s398, 2
          %s400 = smul.addr %s399, 4
          %s401 = scalar_lea.vmem %s0, %s400
        $region48: #{tpu_custom_call.1} parent=43 // pred_fallthru
          _
        // Predicated region
        $region49: #{tpu_custom_call.1} parent=43 // pred_check
          %p402 = pneg %p71
        $region50: #{tpu_custom_call.1} parent=43 // pred_check_branch
          %404 = sbr.rel (%p402) target = $region52
        $region51: #{tpu_custom_call.1} parent=43 // pred_region
          %p405 = scmp.lt.s32.totalorder %s25, 1
          %s406 = scalar_select %p405, %s25, 1
          %s407 = smul.addr %s406, 8
          %s408 = scalar_lea.vmem %s1, %s407
        $region52: #{tpu_custom_call.1} parent=43 // pred_fallthru
          _
        // Predicated region
        $region53: #{tpu_custom_call.1} parent=43 // pred_check
          %p409 = pneg %p97
        $region54: #{tpu_custom_call.1} parent=43 // pred_check_branch
          %411 = sbr.rel (%p409) target = $region56
        $region55: #{tpu_custom_call.1} parent=43 // pred_region
          %p412 = scmp.lt.s32.totalorder %s25, 1
          %s413 = scalar_select %p412, %s25, 1
          %s414 = scalar_lea.vmem %s2, %s413
        $region56: #{tpu_custom_call.1} parent=43 // pred_fallthru
          _
        // Predicated region
        $region57: #{tpu_custom_call.1} parent=43 // pred_check
          %p415 = pneg %p123
        $region58: #{tpu_custom_call.1} parent=43 // pred_check_branch
          %417 = sbr.rel (%p415) target = $region60
        $region59: #{tpu_custom_call.1} parent=43 // pred_region
          %p418 = scmp.lt.s32.totalorder %s25, 1
          %s419 = scalar_select %p418, %s25, 1
          %s420 = smul.addr %s419, 2
          %s421 = smul.addr %s420, 8
          %s422 = scalar_lea.vmem %s3, %s421
        $region60: #{tpu_custom_call.1} parent=43 // pred_fallthru
          _
        // Predicated region
        $region61: #{tpu_custom_call.1} parent=43 // pred_check
          %p423 = pneg %p149
        $region62: #{tpu_custom_call.1} parent=43 // pred_check_branch
          %425 = sbr.rel (%p423) target = $region64
        $region63: #{tpu_custom_call.1} parent=43 // pred_region
          %p426 = scmp.lt.s32.totalorder %s25, 1
          %s427 = scalar_select %p426, %s25, 1
          %s428 = smul.addr %s427, 2
          %s429 = smul.addr %s428, 8
          %s430 = scalar_lea.vmem %s4, %s429
        $region64: #{tpu_custom_call.1} parent=43 // pred_fallthru
          _
      $region44: #{tpu_custom_call.1} parent=5 // pred_fallthru
        _
      %p431 = scmp.le.s32.totalorder 1, %s25
      %p432 = scmp.lt.s32.totalorder %s25, 3
      %p433 = pnand %p431, %p432
      %p434 = pneg %p433
      // Predicated region
      $region65: #{tpu_custom_call.1} parent=5 // pred_check
        _
      $region66: #{tpu_custom_call.1} parent=5 // pred_check_branch
        %436 = sbr.rel (%p433) target = $region68
      $region67: #{tpu_custom_call.1} parent=5 // pred_region
        %s437 = ssub.s32 %s25, 1
        %p438 = scmp.lt.s32.totalorder %s30, 1
        %s439 = scalar_select %p438, %s30, 1
        %s440 = smul.addr %s439, 2
        %s441 = smul.addr %s440, 4
        %s442 = scalar_lea.vmem %s0, %s441
        %p443 = pneg %p51
        %p444 = pneg %p48
        %p445 = scmp.lt.s32.totalorder %s30, 1
        %s446 = scalar_select %p445, %s30, 1
        %s447 = smul.addr %s446, 8
        %s448 = scalar_lea.vmem %s1, %s447
        %p449 = pneg %p77
        %p450 = pneg %p74
        %p451 = scmp.lt.s32.totalorder %s30, 1
        %s452 = scalar_select %p451, %s30, 1
        %s453 = scalar_lea.vmem %s2, %s452
        %p454 = pneg %p103
        %p455 = pneg %p100
        %p456 = scmp.lt.s32.totalorder %s30, 1
        %s457 = scalar_select %p456, %s30, 1
        %s458 = smul.addr %s457, 2
        %s459 = smul.addr %s458, 8
        %s460 = scalar_lea.vmem %s3, %s459
        %p461 = pneg %p129
        %p462 = pneg %p126
        %p463 = scmp.lt.s32.totalorder %s30, 1
        %s464 = scalar_select %p463, %s30, 1
        %s465 = smul.addr %s464, 2
        %s466 = smul.addr %s465, 8
        %s467 = scalar_lea.vmem %s4, %s466
        %p468 = pneg %p155
        %p469 = pneg %p152
        %p470 = pneg %p176
        %p471 = pneg %p173
        %p472 = pneg %p197
        %p473 = pneg %p194
        %p474 = pneg %p218
        %p475 = pneg %p215
        %p476 = pneg %p239
        %p477 = pneg %p236
        %p478 = pneg %p260
        %p479 = pneg %p257
        %p480 = pneg %p281
        %p481 = pneg %p278
        %p482 = pneg %p302
        %p483 = pneg %p299
        %p484 = pneg %p328
        %p485 = pneg %p325
        %s486 = sand.u32 %s315, 1
        %s487 = scalar_lea.sflag [#allocation4], %s486
        %s488 = sand.u32 %s315, 1
        %s489 = smul.addr %s488, 16
        %s490 = scalar_lea.vmem [#allocation3], %s489
        %p491 = pneg %p354
        %p492 = pneg %p351
        %p493 = scmp.lt.s32.totalorder %s30, 1
        %s494 = scalar_select %p493, %s30, 1
        %s495 = smul.addr %s494, 8
        %s496 = scalar_lea.vmem %s13, %s495
        %p497 = scmp.lt.s32.totalorder %s30, 1
        %s498 = scalar_select %p497, %s30, 1
        %s499 = smul.addr %s498, 2
        %s500 = smul.addr %s499, 4
        %s501 = scalar_lea.vmem %s0, %s500
        %p502 = scmp.lt.s32.totalorder %s30, 1
        %s503 = scalar_select %p502, %s30, 1
        %s504 = smul.addr %s503, 8
        %s505 = scalar_lea.vmem %s1, %s504
        %p506 = scmp.lt.s32.totalorder %s30, 1
        %s507 = scalar_select %p506, %s30, 1
        %s508 = scalar_lea.vmem %s2, %s507
        %p509 = scmp.lt.s32.totalorder %s30, 1
        %s510 = scalar_select %p509, %s30, 1
        %s511 = smul.addr %s510, 2
        %s512 = smul.addr %s511, 8
        %s513 = scalar_lea.vmem %s3, %s512
        %p514 = scmp.lt.s32.totalorder %s30, 1
        %s515 = scalar_select %p514, %s30, 1
        %s516 = smul.addr %s515, 2
        %s517 = smul.addr %s516, 8
        %s518 = scalar_lea.vmem %s4, %s517
        %p519 = scmp.lt.s32.totalorder %s30, 1
        %s520 = scalar_select %p519, %s30, 1
        %s521 = smul.addr %s520, 8
        %s522 = scalar_lea.vmem %s13, %s521
        %v524 = vld [vmem:[%s501] sm:$0xf]
        %v525 = vld [vmem:[%s501 + $0x4] sm:$0xf]
        %v526 = vld [vmem:[%s5] sm:$0xf]
        %v527 = vld [vmem:[%s5 + $0x4] sm:$0xf]
        %v528 = vld [vmem:[%s5 + $0x8] sm:$0xf]
        %v529 = vld [vmem:[%s5 + $0xc] sm:$0xf]
        %v530 = vld [vmem:[%s6] sm:$0x1]
        %v532 = vlaneseq
        %v533 = vshrl.u32 %v532, 7
        %v534 = vsub.s32 0, %v533
        %v535 = vrot.slane %v530, %v534
        %v539 = vunpack.c.l.b16 %v524
        %v540 = vunpack.c.l.b16 %v525
        %v541 = vpack.c.b16 %v540, %v539
        %v546 = vunpack.c.l.b16 %v526
        %v547 = vunpack.c.l.b16 %v527
        %v548 = vunpack.c.l.b16 %v528
        %v549 = vunpack.c.l.b16 %v529
        %v550 = vpack.c.b16 %v547, %v546
        %v551 = vpack.c.b16 %v549, %v548
        %vm554 = vcmask 261120
        %v556 = vsel %vm554, %v541, 0
        %558 = vmatprep.subr.bf16.mxu0 0
        %559 = vmatpush1.bf16.msra.mxu0 %v550
        %560 = vmatprep.subr.bf16.mxu0 0
        %561 = vmatpush1.bf16.msra.mxu0 %v551
        %562 = vmatprep.subr.bf16.mxu0 0
        %563 = vmatpush1.bf16.msra.mxu0 0
        %564 = vmatprep.subr.bf16.mxu0 0
        %565 = vmatpush1.bf16.msra.mxu0 0
        %566 = vmatprep.subr.bf16.mxu0 0
        %567 = vmatpush1.bf16.msra.mxu0 0
        %568 = vmatprep.subr.bf16.mxu0 0
        %569 = vmatpush1.bf16.msra.mxu0 0
        %570 = vmatprep.subr.bf16.mxu0 0
        %571 = vmatpush1.bf16.msra.mxu0 0
        %572 = vmatprep.subr.bf16.mxu0 0
        %573 = vmatpush1.bf16.msra.mxu0 0
        %574 = vmatprep.subr.bf16.mxu0 0
        %575 = vmatpush1.bf16.msra.mxu0 0
        %576 = vmatprep.subr.bf16.mxu0 0
        %577 = vmatpush1.bf16.msra.mxu0 0
        %578 = vmatprep.subr.bf16.mxu0 0
        %579 = vmatpush1.bf16.msra.mxu0 0
        %580 = vmatprep.subr.bf16.mxu0 0
        %581 = vmatpush1.bf16.msra.mxu0 0
        %582 = vmatprep.subr.bf16.mxu0 0
        %583 = vmatpush1.bf16.msra.mxu0 0
        %584 = vmatprep.subr.bf16.mxu0 0
        %585 = vmatpush1.bf16.msra.mxu0 0
        %586 = vmatprep.subr.bf16.mxu0 0
        %587 = vmatpush1.bf16.msra.mxu0 0
        %588 = vmatprep.subr.bf16.mxu0 0
        %589 = vmatpush1.bf16.msra.mxu0 0
        %590 = vmatprep.mubr.bf16.mxu0 0
        %591 = vmatmul.mubr.bf16.gmra.mrb[0].mxu0 %v556
        %v592 = vpop.f32.mrb[0].mxu0
        %v593 = vadd.f32 %v535, %v592
        %v594 = vpop.f32.mrb[0].mxu0
        %v595 = vpop.f32.mrb[0].mxu0
        %v596 = vadd.f32 %v535, %v595
        %v597 = vpop.f32.mrb[0].mxu0
        %598 = vdwg.mxu0
        %v599 = vpack.c.bf16 %v596, %v593
        %v600 = vld [vmem:[%s7] sm:$0xf]
        %v601 = vld [vmem:[%s7 + $0x4] sm:$0xf]
        %v602 = vld [vmem:[%s7 + $0x8] sm:$0xf]
        %v603 = vld [vmem:[%s7 + $0xc] sm:$0xf]
        %v604 = vld [vmem:[%s7 + $0x10] sm:$0xf]
        %v605 = vld [vmem:[%s7 + $0x14] sm:$0xf]
        %v606 = vld [vmem:[%s7 + $0x18] sm:$0xf]
        %v607 = vld [vmem:[%s7 + $0x1c] sm:$0xf]
        %v608 = vld [vmem:[%s7 + $0x20] sm:$0xf]
        %v609 = vld [vmem:[%s7 + $0x24] sm:$0xf]
        %v610 = vld [vmem:[%s7 + $0x28] sm:$0xf]
        %v611 = vld [vmem:[%s7 + $0x2c] sm:$0xf]
        %v612 = vld [vmem:[%s7 + $0x30] sm:$0xf]
        %v613 = vld [vmem:[%s7 + $0x34] sm:$0xf]
        %v614 = vld [vmem:[%s7 + $0x38] sm:$0xf]
        %v615 = vld [vmem:[%s7 + $0x3c] sm:$0xf]
        %v616 = vld [vmem:[%s8] sm:$0x1]
        %v618 = vlaneseq
        %v619 = vshrl.u32 %v618, 7
        %v620 = vsub.s32 0, %v619
        %v621 = vrot.slane %v616, %v620
        %v639 = vunpack.c.l.b16 %v600
        %v640 = vunpack.c.l.b16 %v601
        %v641 = vunpack.c.l.b16 %v602
        %v642 = vunpack.c.l.b16 %v603
        %v643 = vunpack.c.l.b16 %v604
        %v644 = vunpack.c.l.b16 %v605
        %v645 = vunpack.c.l.b16 %v606
        %v646 = vunpack.c.l.b16 %v607
        %v647 = vunpack.c.l.b16 %v608
        %v648 = vunpack.c.l.b16 %v609
        %v649 = vunpack.c.l.b16 %v610
        %v650 = vunpack.c.l.b16 %v611
        %v651 = vunpack.c.l.b16 %v612
        %v652 = vunpack.c.l.b16 %v613
        %v653 = vunpack.c.l.b16 %v614
        %v654 = vunpack.c.l.b16 %v615
        %v655 = vpack.c.b16 %v640, %v639
        %v656 = vpack.c.b16 %v642, %v641
        %v657 = vpack.c.b16 %v644, %v643
        %v658 = vpack.c.b16 %v646, %v645
        %v659 = vpack.c.b16 %v648, %v647
        %v660 = vpack.c.b16 %v650, %v649
        %v661 = vpack.c.b16 %v652, %v651
        %v662 = vpack.c.b16 %v654, %v653
        %671 = vmatprep.subr.bf16.mxu0 0
        %672 = vmatpush1.bf16.msra.mxu0 %v655
        %673 = vmatprep.subr.bf16.mxu0 0
        %674 = vmatpush1.bf16.msra.mxu0 %v656
        %675 = vmatprep.subr.bf16.mxu0 0
        %676 = vmatpush1.bf16.msra.mxu0 %v657
        %677 = vmatprep.subr.bf16.mxu0 0
        %678 = vmatpush1.bf16.msra.mxu0 %v658
        %679 = vmatprep.subr.bf16.mxu0 0
        %680 = vmatpush1.bf16.msra.mxu0 %v659
        %681 = vmatprep.subr.bf16.mxu0 0
        %682 = vmatpush1.bf16.msra.mxu0 %v660
        %683 = vmatprep.subr.bf16.mxu0 0
        %684 = vmatpush1.bf16.msra.mxu0 %v661
        %685 = vmatprep.subr.bf16.mxu0 0
        %686 = vmatpush1.bf16.msra.mxu0 %v662
        %687 = vmatprep.subr.bf16.mxu0 0
        %688 = vmatpush1.bf16.msra.mxu0 0
        %689 = vmatprep.subr.bf16.mxu0 0
        %690 = vmatpush1.bf16.msra.mxu0 0
        %691 = vmatprep.subr.bf16.mxu0 0
        %692 = vmatpush1.bf16.msra.mxu0 0
        %693 = vmatprep.subr.bf16.mxu0 0
        %694 = vmatpush1.bf16.msra.mxu0 0
        %695 = vmatprep.subr.bf16.mxu0 0
        %696 = vmatpush1.bf16.msra.mxu0 0
        %697 = vmatprep.subr.bf16.mxu0 0
        %698 = vmatpush1.bf16.msra.mxu0 0
        %699 = vmatprep.subr.bf16.mxu0 0
        %700 = vmatpush1.bf16.msra.mxu0 0
        %701 = vmatprep.subr.bf16.mxu0 0
        %702 = vmatpush1.bf16.msra.mxu0 0
        %703 = vmatprep.mubr.bf16.mxu0 0
        %704 = vmatmul.mubr.bf16.gmra.mrb[0].mxu0 %v599
        %v705 = vpop.f32.mrb[0].mxu0
        %v706 = vadd.f32 %v621, %v705
        %v707 = vpop.f32.mrb[0].mxu0
        %v708 = vpop.f32.mrb[0].mxu0
        %v709 = vadd.f32 %v621, %v708
        %v710 = vpop.f32.mrb[0].mxu0
        %711 = vdwg.mxu0
        %v712 = vtanh.pop %v706
        %v713 = vtanh.pop %v709
        %v714 = vld [vmem:[%s9] sm:$0x1]
        %v716 = vlaneseq
        %v717 = vshrl.u32 %v716, 7
        %v718 = vsub.s32 0, %v717
        %v719 = vrot.slane %v714, %v718
        %v721 = vmul.f32 %v712, %v719
        %v722 = vmul.f32 %v713, %v719
        %723 = vadd.xlane.f32.xlu0 %v721
        %v724 = vpop.xlane.xlu0 %723
        %725 = vadd.xlane.f32.xlu0 %v722
        %v726 = vpop.xlane.xlu0 %725
        %727 = vxpose.xlu0.b32.start [1/16] %v724, 128
        %728 = vxpose.xlu0.b32.cont [2/16] %v726, 128
        %729 = vxpose.xlu0.b32.cont [3/16] 0.0, 128
        %730 = vxpose.xlu0.b32.cont [4/16] 0.0, 128
        %731 = vxpose.xlu0.b32.cont [5/16] 0.0, 128
        %732 = vxpose.xlu0.b32.cont [6/16] 0.0, 128
        %733 = vxpose.xlu0.b32.cont [7/16] 0.0, 128
        %734 = vxpose.xlu0.b32.cont [8/16] 0.0, 128
        %735 = vxpose.xlu0.b32.cont [9/16] 0.0, 128
        %736 = vxpose.xlu0.b32.cont [10/16] 0.0, 128
        %737 = vxpose.xlu0.b32.cont [11/16] 0.0, 128
        %738 = vxpose.xlu0.b32.cont [12/16] 0.0, 128
        %739 = vxpose.xlu0.b32.cont [13/16] 0.0, 128
        %740 = vxpose.xlu0.b32.cont [14/16] 0.0, 128
        %741 = vxpose.xlu0.b32.cont [15/16] 0.0, 128
        %742 = vxpose.xlu0.b32.end [16/16] 0.0, 128
        %v743 = vpop.trf.xlu0
        %v744 = vpop.trf.xlu0
        %v745 = vpop.trf.xlu0
        %v746 = vpop.trf.xlu0
        %v747 = vpop.trf.xlu0
        %v748 = vpop.trf.xlu0
        %v749 = vpop.trf.xlu0
        %v750 = vpop.trf.xlu0
        %v751 = vpop.trf.xlu0
        %v752 = vpop.trf.xlu0
        %v753 = vpop.trf.xlu0
        %v754 = vpop.trf.xlu0
        %v755 = vpop.trf.xlu0
        %v756 = vpop.trf.xlu0
        %v757 = vpop.trf.xlu0
        %v758 = vpop.trf.xlu0
        %v759 = vlaneseq
        %v760 = vshrl.u32 %v759, 7
        %v761 = vld [vmem:[%s508] sm:$0x1]
        %v762 = vlaneseq
        %v763 = vshrl.u32 %v762, 7
        %v764 = vsub.s32 0, %v763
        %v765 = vrot.slane %v761, %v764
        %vm766 = vcmp.eq.s32.totalorder %v760, %v765
        %v767 = vsel %vm766, 1, 0
        %v768 = vcvt.s32.f32 %v767
        %v769 = vlaneseq
        %v770 = vshrl.u32 %v769, 7
        %v771 = vsub.s32 0, %v770
        %v772 = vrot.slane %v743, %v771
        %v773 = vsel %vm766, %v772, -1e+10
        %vm774 = vcmask 128000
        %v775 = vsel %vm774, %v773, -inf
        %776 = vmax.xlane.f32.xlu0 %v775
        %v777 = vpop.xlane.xlu0 %776
        %v778 = vsub.f32 %v773, %v777
        %v779 = vmul.f32 %v778, 1.442695
        %v780 = vpow.pop %v779
        %v781 = vmul.f32 %v780, %v768
        %v782 = vsel %vm774, %v781, 0.0
        %783 = vadd.xlane.f32.xlu0 %v782
        %v784 = vpop.xlane.xlu0 %783
        %v785 = vmax.f32 %v784, 1e-20
        %v786 = vrcp.pop %v785
        %v787 = vmul.f32 %v781, %v786
        %v788 = vpack.c.bf16 %v787, %v787
        %vm789 = vcmask 130048
        %v791 = vsel %vm789, %v788, 0
        %793 = vmatprep.subr.bf16.mxu0 0
        %794 = vmatpush1.bf16.msra.mxu0 %v599
        %795 = vmatprep.subr.bf16.mxu0 0
        %796 = vmatpush1.bf16.msra.mxu0 0
        %797 = vmatprep.subr.bf16.mxu0 0
        %798 = vmatpush1.bf16.msra.mxu0 0
        %799 = vmatprep.subr.bf16.mxu0 0
        %800 = vmatpush1.bf16.msra.mxu0 0
        %801 = vmatprep.subr.bf16.mxu0 0
        %802 = vmatpush1.bf16.msra.mxu0 0
        %803 = vmatprep.subr.bf16.mxu0 0
        %804 = vmatpush1.bf16.msra.mxu0 0
        %805 = vmatprep.subr.bf16.mxu0 0
        %806 = vmatpush1.bf16.msra.mxu0 0
        %807 = vmatprep.subr.bf16.mxu0 0
        %808 = vmatpush1.bf16.msra.mxu0 0
        %809 = vmatprep.subr.bf16.mxu0 0
        %810 = vmatpush1.bf16.msra.mxu0 0
        %811 = vmatprep.subr.bf16.mxu0 0
        %812 = vmatpush1.bf16.msra.mxu0 0
        %813 = vmatprep.subr.bf16.mxu0 0
        %814 = vmatpush1.bf16.msra.mxu0 0
        %815 = vmatprep.subr.bf16.mxu0 0
        %816 = vmatpush1.bf16.msra.mxu0 0
        %817 = vmatprep.subr.bf16.mxu0 0
        %818 = vmatpush1.bf16.msra.mxu0 0
        %819 = vmatprep.subr.bf16.mxu0 0
        %820 = vmatpush1.bf16.msra.mxu0 0
        %821 = vmatprep.subr.bf16.mxu0 0
        %822 = vmatpush1.bf16.msra.mxu0 0
        %823 = vmatprep.subr.bf16.mxu0 0
        %824 = vmatpush1.bf16.msra.mxu0 0
        %825 = vmatprep.mubr.bf16.mxu0 0
        %826 = vmatmul.mubr.bf16.gmra.mrb[0].mxu0 %v791
        %v827 = vpop.f32.mrb[0].mxu0
        %v828 = vadd.f32 0.0, %v827
        %v829 = vpop.f32.mrb[0].mxu0
        %v830 = vpop.f32.mrb[0].mxu0
        %v831 = vpop.f32.mrb[0].mxu0
        %832 = vdwg.mxu0
        %833 = vst [vmem:[%s522] sm:$0x3f] %v828
        %v834 = vld [vmem:[%s505] sm:$0x3f]
        %v835 = vld [vmem:[%s10] sm:$0x1]
        %v837 = vlaneseq
        %v838 = vshrl.u32 %v837, 7
        %v839 = vsub.s32 0, %v838
        %v840 = vrot.slane %v835, %v839
        %v842 = vmul.f32 %v834, %v840
        %vm843 = vcmask 259072
        %v844 = vsel %vm843, %v842, 0.0
        %845 = vadd.xlane.f32.xlu0 %v844
        %v846 = vpop.xlane.xlu0 %845
        %v847 = vld [vmem:[#allocation2] sm:$0x1]
        %v849 = vlaneseq
        %v850 = vshrl.u32 %v849, 7
        %v851 = vsub.s32 0, %v850
        %v852 = vrot.slane %v847, %v851
        %v854 = vadd.f32 %v846, %v852
        %855 = vxpose.xlu0.b32.start [1/16] %v854, 128
        %856 = vxpose.xlu0.b32.cont [2/16] 0.0, 128
        %857 = vxpose.xlu0.b32.cont [3/16] 0.0, 128
        %858 = vxpose.xlu0.b32.cont [4/16] 0.0, 128
        %859 = vxpose.xlu0.b32.cont [5/16] 0.0, 128
        %860 = vxpose.xlu0.b32.cont [6/16] 0.0, 128
        %861 = vxpose.xlu0.b32.cont [7/16] 0.0, 128
        %862 = vxpose.xlu0.b32.cont [8/16] 0.0, 128
        %863 = vxpose.xlu0.b32.cont [9/16] 0.0, 128
        %864 = vxpose.xlu0.b32.cont [10/16] 0.0, 128
        %865 = vxpose.xlu0.b32.cont [11/16] 0.0, 128
        %866 = vxpose.xlu0.b32.cont [12/16] 0.0, 128
        %867 = vxpose.xlu0.b32.cont [13/16] 0.0, 128
        %868 = vxpose.xlu0.b32.cont [14/16] 0.0, 128
        %869 = vxpose.xlu0.b32.cont [15/16] 0.0, 128
        %870 = vxpose.xlu0.b32.end [16/16] 0.0, 128
        %v871 = vpop.trf.xlu0
        %v872 = vpop.trf.xlu0
        %v873 = vpop.trf.xlu0
        %v874 = vpop.trf.xlu0
        %v875 = vpop.trf.xlu0
        %v876 = vpop.trf.xlu0
        %v877 = vpop.trf.xlu0
        %v878 = vpop.trf.xlu0
        %v879 = vpop.trf.xlu0
        %v880 = vpop.trf.xlu0
        %v881 = vpop.trf.xlu0
        %v882 = vpop.trf.xlu0
        %v883 = vpop.trf.xlu0
        %v884 = vpop.trf.xlu0
        %v885 = vpop.trf.xlu0
        %v886 = vpop.trf.xlu0
        %v887 = vlaneseq
        %v888 = vand.u32 %v887, 127
        %v889 = vld [vmem:[%s513] sm:$0xff]
        %v890 = vld [vmem:[%s513 + $0x8] sm:$0xff]
        %891 = vset.pattern.permute.xlu0 0
        %892 = vperm.xlu0 %891, %v889
        %v893 = vpop.permute.xlu0 %892
        %894 = vset.pattern.permute.xlu0 0
        %895 = vperm.xlu0 %894, %v890
        %v896 = vpop.permute.xlu0 %895
        %vm897 = vcmp.eq.s32.totalorder %v888, %v893
        %vm898 = vcmp.eq.s32.totalorder %v888, %v896
        %v899 = vsel %vm897, 1, 0
        %v900 = vsel %vm898, 1, 0
        %v901 = vcvt.s32.f32 %v899
        %v902 = vcvt.s32.f32 %v900
        %v903 = vlaneseq
        %v904 = vshrl.u32 %v903, 7
        %v905 = vsub.s32 0, %v904
        %v906 = vrot.slane %v871, %v905
        %v907 = vmul.f32 %v901, %v906
        %v908 = vmul.f32 %v902, %v906
        %vm909 = vcmask 48128
        %v910 = vsel %vm909, %v907, 0.0
        %911 = vadd.xlane.f32.xlu0 %v910
        %v912 = vpop.xlane.xlu0 %911
        %v913 = vsel %vm909, %v908, 0.0
        %914 = vadd.xlane.f32.xlu0 %v913
        %v915 = vpop.xlane.xlu0 %914
        %vm916 = vcmp.eq.s32.totalorder %v888, 0
        %v917 = vsel %vm916, 1, 0
        %v918 = vcvt.s32.f32 %v917
        %v919 = vmul.f32 %v912, %v918
        %v920 = vmul.f32 %v915, %v918
        %v921 = vadd.f32 %v593, %v919
        %v922 = vadd.f32 %v596, %v920
        %v923 = vld [vmem:[%s518] sm:$0xff]
        %v924 = vld [vmem:[%s518 + $0x8] sm:$0xff]
        %vm925 = vcmp.ne.f32.partialorder %v923, 0.0
        %vm926 = vcmp.ne.f32.partialorder %v924, 0.0
        %v927 = vsel %vm925, 1, 0
        %v928 = vsel %vm926, 1, 0
        %929 = vset.pattern.permute.xlu0 0
        %930 = vperm.xlu0 %929, %v927
        %v931 = vpop.permute.xlu0 %930
        %932 = vset.pattern.permute.xlu0 0
        %933 = vperm.xlu0 %932, %v928
        %v934 = vpop.permute.xlu0 %933
        %vm935 = vcmp.eq.s32.totalorder %v931, 1
        %vm936 = vcmp.eq.s32.totalorder %v934, 1
        %v937 = vsel %vm935, %v921, 0.0
        %v938 = vsel %vm936, %v922, 0.0
        %939 = vst [vmem:[%s490] sm:$0xff] %v937
        %940 = vst [vmem:[%s490 + $0x8] sm:$0xff] %v938
        %s941 = sand.u32 %s315, 1
        %s942 = scalar_lea.sflag [#allocation4], %s941
        %s943 = sand.u32 %s315, 1
        %s944 = smul.addr %s943, 16
        %s945 = scalar_lea.vmem [#allocation3], %s944
        %p946 = scmp.lt.s32.totalorder %s30, 1
        %s947 = scalar_select %p946, %s30, 1
        %s948 = smul.addr %s947, 8
        %s949 = scalar_lea.vmem %s13, %s948
        // Predicated region
        $region69: #{tpu_custom_call.1} parent=67 // pred_check
          %p950 = pneg %p325
        $region70: #{tpu_custom_call.1} parent=67 // pred_check_branch
          %952 = sbr.rel (%p950) target = $region72
        $region71: #{tpu_custom_call.1} parent=67 // pred_region
          %s954 = ssub.s32 256, 256
          %955 = vsyncadd %s942, %s954
          %s956 = smul.addr %s30, 2
          %s957 = smul.addr %s956, 128
          %s958 = scalar_lea.hbm %s12, %s957
          %s959 = sshll.u32 %s945, 4
          %s960 = int_to_ptr.vmem [resolvable:$true] %s959
          %965 = dma.vmem_to_hbm [thread:$0]  %s960, 256, %s958, %s942, 128, 128, 8
        $region72: #{tpu_custom_call.1} parent=67 // pred_fallthru
          _
        // Predicated region
        $region73: #{tpu_custom_call.1} parent=67 // pred_check
          %p966 = pneg %p351
        $region74: #{tpu_custom_call.1} parent=67 // pred_check_branch
          %968 = sbr.rel (%p966) target = $region76
        $region75: #{tpu_custom_call.1} parent=67 // pred_region
          _
        $region76: #{tpu_custom_call.1} parent=67 // pred_fallthru
          _
      $region68: #{tpu_custom_call.1} parent=5 // pred_fallthru
        _
      %p969 = scmp.le.s32.totalorder 2, %s25
      // Predicated region
      $region77: #{tpu_custom_call.1} parent=5 // pred_check
        %p970 = pneg %p969
      $region78: #{tpu_custom_call.1} parent=5 // pred_check_branch
        %972 = sbr.rel (%p970) target = $region80
      $region79: #{tpu_custom_call.1} parent=5 // pred_region
        %s973 = ssub.s32 %s25, 2
        // Predicated region
        $region81: #{tpu_custom_call.1} parent=79 // pred_check
          %p974 = pneg %p331
        $region82: #{tpu_custom_call.1} parent=79 // pred_check_branch
          %976 = sbr.rel (%p974) target = $region84
        $region83: #{tpu_custom_call.1} parent=79 // pred_region
          %s977 = sand.u32 %s316, 1
          %s978 = scalar_lea.sflag [#allocation4], %s977
          %s979 = sand.u32 %s316, 1
          %s980 = smul.addr %s979, 16
          %s981 = scalar_lea.vmem [#allocation3], %s980
          %982 = dma.done %s978, 256
        $region84: #{tpu_custom_call.1} parent=79 // pred_fallthru
          _
        // Predicated region
        $region85: #{tpu_custom_call.1} parent=79 // pred_check
          %p983 = pneg %p357
        $region86: #{tpu_custom_call.1} parent=79 // pred_check_branch
          %985 = sbr.rel (%p983) target = $region88
        $region87: #{tpu_custom_call.1} parent=79 // pred_region
          %p986 = scmp.lt.s32.totalorder %s31, 1
          %s987 = scalar_select %p986, %s31, 1
          %s988 = smul.addr %s987, 8
          %s989 = scalar_lea.vmem %s13, %s988
        $region88: #{tpu_custom_call.1} parent=79 // pred_fallthru
          _
      $region80: #{tpu_custom_call.1} parent=5 // pred_fallthru
        _
    $region6: #{tpu_custom_call.1} parent=1 // loop_footer
      %s29 = sadd.s32 1, %s25
    $region7: #{tpu_custom_call.1} parent=1 // loop_footer_branch
      %24 = sbr.rel target = $region3
    $region8: #{tpu_custom_call.1} parent=1 // loop_exit
      _
    %990 = vsyncpa [#allocation4], 1
    %s991 = scalar_lea.sflag [#allocation4], 1
    %992 = vsyncpa %s991, 1

</llo_original>
